<compile_context>
chip_gen: v6e
topology: v6e:2x2x1
jax: 0.10.0
libtpu: 0.0.40
codegen_flags: <defaults>
</compile_context>

<pallas_src>
import functools

import jax
import jax.numpy as jnp
from jax import lax
from jax.experimental import pallas as pl
from jax.experimental.pallas import tpu as pltpu

EPS = 1e-5
_VMEM_LIMIT = 32 * 1024 * 1024          # safe scoped-VMEM ceiling on v5e/v6e/v7x
_TARGET_BLOCK_BYTES = 2 * 1024 * 1024   # ~2 MiB HBM-side blocks (sweet spot on all gens)


# --------------------------------------------------------------------------
# Kernels
# --------------------------------------------------------------------------
def _moments_kernel(x_ref, center_ref, sum_ref, sumsq_ref,
                    *, L, TL, num_l_inner, mask_tail):
    """Pass A: per-row partial sum(d0), sum(d0^2) with d0 = x - running_mean."""
    l = pl.program_id(2)

    @pl.when(l == 0)
    def _():
        sum_ref[...] = jnp.zeros_like(sum_ref)
        sumsq_ref[...] = jnp.zeros_like(sumsq_ref)

    x = x_ref[...].astype(jnp.float32)           # (R, TL)
    d = x - center_ref[...]                      # broadcast (R, 1)
    if mask_tail:
        tile = pl.program_id(0) * num_l_inner + l
        lane = lax.broadcasted_iota(jnp.int32, d.shape, 1)
        d = jnp.where(tile * TL + lane < L, d, 0.0)

    sum_ref[...] += jnp.sum(d, axis=1, keepdims=True)       # (R, 1)
    sumsq_ref[...] += jnp.sum(d * d, axis=1, keepdims=True)


def _filtered_kernel(x_ref, center_ref, thr_ref, cnt_ref, s1_ref, s2_ref,
                     *, L, TL, num_l_inner, mask_tail, chunk):
    """Pass B: masked moments centered on the batch mean.

    sel = |x - mean| < Thres*sqrt(var+eps); accumulates cnt, S1=sum(d*sel),
    S2=sum(d^2*sel) with d = x - mean.  The lane tile is processed in
    (R, chunk) sub-slabs so the f32 temporaries stay vreg-resident.
    """
    l = pl.program_id(2)

    @pl.when(l == 0)
    def _():
        cnt_ref[...] = jnp.zeros_like(cnt_ref)
        s1_ref[...] = jnp.zeros_like(s1_ref)
        s2_ref[...] = jnp.zeros_like(s2_ref)

    center = center_ref[...]                     # (R, 1)
    thr = thr_ref[...]                           # (R, 1)
    tile = pl.program_id(0) * num_l_inner + l
    R = x_ref.shape[0]

    def moments(x, lane_base):
        d = x.astype(jnp.float32) - center
        sel = jnp.abs(d) < thr
        if mask_tail:
            lane = lax.broadcasted_iota(jnp.int32, d.shape, 1)
            in_range = lane_base + lane < L
            sel = jnp.logical_and(sel, in_range)
            d = jnp.where(in_range, d, 0.0)      # keep NaN/Inf padding out of S1/S2
        sel_f = sel.astype(jnp.float32)
        ds = d * sel_f
        return (jnp.sum(sel_f, axis=1, keepdims=True),
                jnp.sum(ds, axis=1, keepdims=True),
                jnp.sum(d * ds, axis=1, keepdims=True))

    num_chunks = TL // chunk
    if num_chunks <= 1:
        dcnt, ds1, ds2 = moments(x_ref[...], tile * TL)
    else:
        def body(i, carry):
            cnt, s1, s2 = carry
            start = pl.multiple_of(i * chunk, chunk)
            c_cnt, c_s1, c_s2 = moments(x_ref[:, pl.ds(start, chunk)],
                                        tile * TL + start)
            return cnt + c_cnt, s1 + c_s1, s2 + c_s2

        zero = jnp.zeros((R, 1), jnp.float32)
        dcnt, ds1, ds2 = lax.fori_loop(0, num_chunks, body, (zero, zero, zero),
                                       unroll=True)

    cnt_ref[...] += dcnt
    s1_ref[...] += ds1
    s2_ref[...] += ds2


def _apply_kernel(x_ref, scale_ref, bias_ref, out_ref):
    """Pass C / eval branch: out = x * scale + bias (per-row FMA, lane-dense)."""
    x = x_ref[...].astype(jnp.float32)
    out_ref[...] = (x * scale_ref[...] + bias_ref[...]).astype(out_ref.dtype)


# --------------------------------------------------------------------------
# Tiling helpers
# --------------------------------------------------------------------------
def _choose_rows(NC, cap=64):
    """Row-tile height: a multiple of 8 dividing NC (sublane packing for f32),
    or all rows when NC is small / has no such divisor."""
    if NC <= cap:
        return NC
    r = (cap // 8) * 8
    while r >= 8:
        if NC % r == 0:
            return r
        r -= 8
    return NC


def _choose_tl(R, L, itemsize, target_bytes=_TARGET_BLOCK_BYTES):
    """Lane tile: full L when small, else a multiple of 128 sized so one
    (R, TL) HBM-side block is ~target_bytes (dtype-aware).  Prefers a TL that
    divides L so the tail-mask code is compiled out in the common case."""
    if L <= 512:
        return L
    max_tl = max(128, (target_bytes // max(R * itemsize, 1)) // 128 * 128)
    if max_tl >= L:
        return L
    tl = max_tl
    while tl >= 128:
        if L % tl == 0:
            return tl
        tl -= 128
    return max_tl  # no 128-multiple divisor: fall back, tail handled via mask


def _choose_chunk(TL):
    """Sub-slab width for pass B so temporaries stay vreg-resident."""
    for c in (512, 384, 256, 128):
        if c <= TL and TL % c == 0:
            return c
    return TL


def _reduction_specs(NC, L, R, TL):
    """Grid / specs shared by the two reduction passes."""
    num_r = NC // R
    num_l = pl.cdiv(L, TL)
    mask_tail = (L % TL) != 0
    # Extra parallel split of the lane axis so both v7x TensorCores are busy
    # even when N (and hence num_r) is tiny.
    S = 2 if (num_l >= 2 and num_l % 2 == 0 and R % 8 == 0) else 1
    num_l_inner = num_l // S
    grid = (S, num_r, num_l_inner)

    x_kwargs = {}
    if num_l_inner >= 3:
        x_kwargs = dict(pipeline_mode=pl.Buffered(3))   # deeper input pipelining
    x_spec = pl.BlockSpec((R, TL), lambda s, r, l: (r, s * num_l_inner + l),
                          **x_kwargs)
    row_spec = pl.BlockSpec((R, 1), lambda s, r, l: (r, 0))
    acc_spec = pl.BlockSpec((R, 1), lambda s, r, l: (s * num_r + r, 0))
    acc_shape = jax.ShapeDtypeStruct((S * NC, 1), jnp.float32)
    params = pltpu.CompilerParams(
        dimension_semantics=("parallel", "parallel", "arbitrary"),
        vmem_limit_bytes=_VMEM_LIMIT)
    return grid, S, num_l_inner, mask_tail, x_spec, row_spec, acc_spec, acc_shape, params


def _apply(x2, scale_rows, bias_rows, R, TL):
    NC, L = x2.shape
    num_r = NC // R
    num_l = pl.cdiv(L, TL)
    return pl.pallas_call(
        _apply_kernel,
        grid=(num_r, num_l),
        in_specs=[
            pl.BlockSpec((R, TL), lambda r, l: (r, l)),
            pl.BlockSpec((R, 1), lambda r, l: (r, 0)),
            pl.BlockSpec((R, 1), lambda r, l: (r, 0)),
        ],
        out_specs=pl.BlockSpec((R, TL), lambda r, l: (r, l)),
        out_shape=jax.ShapeDtypeStruct((NC, L), x2.dtype),
        compiler_params=pltpu.CompilerParams(
            dimension_semantics=("parallel", "parallel"),
            vmem_limit_bytes=_VMEM_LIMIT),
    )(x2, scale_rows, bias_rows)


# --------------------------------------------------------------------------
# Forward wrappers
# --------------------------------------------------------------------------
@jax.jit
def bn2d_filtered_moments_train(x_nchw, gamma, beta, running_mean, running_var,
                                thres=1.0, alpha=0.9):
    """Training-mode forward. Returns (bn_nchw, new_running_mean, new_running_var)."""
    N, C, H, W = x_nchw.shape
    L = H * W
    NC = N * C
    M = N * L
    x2 = x_nchw.reshape(NC, L)               # free, contiguous view of NCHW

    R = _choose_rows(NC)
    itemsize = jnp.dtype(x_nchw.dtype).itemsize
    TL = _choose_tl(R, L, itemsize)
    chunk = _choose_chunk(TL)

    (grid, S, num_l_inner, mask_tail,
     x_spec, row_spec, acc_spec, acc_shape, params) = _reduction_specs(NC, L, R, TL)

    def per_row(v):        # per-channel (C,) -> per-row (NC, 1) f32 (row = n*C + c)
        return jnp.broadcast_to(v.astype(jnp.float32)[None, :], (N, C)).reshape(NC, 1)

    def per_channel_sum(p):  # (S*NC, 1) partials -> (C,) totals
        return jnp.sum(p.reshape(S * N, C), axis=0)

    # ---- Pass A: batch moments, centered on the running mean (cancellation-safe) ----
    psum, psumsq = pl.pallas_call(
        functools.partial(_moments_kernel, L=L, TL=TL,
                          num_l_inner=num_l_inner, mask_tail=mask_tail),
        grid=grid,
        in_specs=[x_spec, row_spec],
        out_specs=(acc_spec, acc_spec),
        out_shape=(acc_shape, acc_shape),
        compiler_params=params,
    )(x2, per_row(running_mean))

    s1a = per_channel_sum(psum)
    s2a = per_channel_sum(psumsq)
    rmean = running_mean.astype(jnp.float32)
    mean = rmean + s1a / M
    var = (s2a - s1a * s1a / M) / (M - 1)                 # unbiased, like torch.var
    thr = thres * jnp.sqrt(var + EPS)                     # |x - mean| threshold

    # ---- Pass B: filtered moments centered on the batch mean ----
    pcnt, ps1, ps2 = pl.pallas_call(
        functools.partial(_filtered_kernel, L=L, TL=TL, num_l_inner=num_l_inner,
                          mask_tail=mask_tail, chunk=chunk),
        grid=grid,
        in_specs=[x_spec, row_spec, row_spec],
        out_specs=(acc_spec, acc_spec, acc_spec),
        out_shape=(acc_shape, acc_shape, acc_shape),
        compiler_params=params,
    )(x2, per_row(mean), per_row(thr))

    cnt = per_channel_sum(pcnt)
    s1 = per_channel_sum(ps1)
    s2 = per_channel_sum(ps2)
    fmean = mean + s1 / cnt
    # NOTE: Inf/NaN when a channel selects <=1 element -- matches the PyTorch reference.
    fvar = (s2 - s1 * s1 / cnt) / (cnt - 1.0)

    # ---- Pass C: affine apply with folded per-channel scale/bias ----
    inv_std = lax.rsqrt(fvar + EPS)
    scale = gamma.astype(jnp.float32) * inv_std
    bias = beta.astype(jnp.float32) - fmean * scale
    bn = _apply(x2, per_row(scale), per_row(bias), R, TL).reshape(N, C, H, W)

    # running-stat EMA update (detached buffers in the PyTorch module) -- tiny glue.
    new_mean = alpha * running_mean + (1.0 - alpha) * fmean.astype(running_mean.dtype)
    new_var = alpha * running_var + (1.0 - alpha) * fvar.astype(running_var.dtype)
    return bn, new_mean, new_var


@jax.jit
def bn2d_filtered_moments_eval(x_nchw, gamma, beta, running_mean, running_var):
    """Eval-mode forward using stored running stats."""
    N, C, H, W = x_nchw.shape
    L = H * W
    NC = N * C
    x2 = x_nchw.reshape(NC, L)
    R = _choose_rows(NC)
    itemsize = jnp.dtype(x_nchw.dtype).itemsize
    TL = _choose_tl(R, L, itemsize)
    inv_std = lax.rsqrt(running_var.astype(jnp.float32) + EPS)
    scale = gamma.astype(jnp.float32) * inv_std
    bias = beta.astype(jnp.float32) - running_mean.astype(jnp.float32) * scale
    scale_rows = jnp.broadcast_to(scale[None, :], (N, C)).reshape(NC, 1)
    bias_rows = jnp.broadcast_to(bias[None, :], (N, C)).reshape(NC, 1)
    return _apply(x2, scale_rows, bias_rows, R, TL).reshape(N, C, H, W)


# --------------------------------------------------------------------------
# Pure-JAX reference (mirrors the PyTorch training branch) + test
# --------------------------------------------------------------------------
def _reference_train(x_nchw, gamma, beta, thres=1.0):
    N, C, H, W = x_nchw.shape
    x = jnp.transpose(x_nchw, (0, 2, 3, 1)).reshape(-1, C).astype(jnp.float32)
    mean = jnp.mean(x, axis=0)
    var = jnp.var(x, axis=0, ddof=1)
    normalized = (x - mean) / jnp.sqrt(var + EPS)
    sel = ((normalized < thres) & (normalized > -thres)).astype(x.dtype)
    fmean = jnp.sum(x * sel, axis=0) / jnp.sum(sel, axis=0)
    fvar = jnp.sum(((x - fmean) * sel) ** 2, axis=0) / (jnp.sum(sel, axis=0) - 1.0)
    bn = gamma * (x - fmean) / jnp.sqrt(fvar + EPS) + beta
    return bn.reshape(N, H, W, C).transpose(0, 3, 1, 2), fmean, fvar


if __name__ == "__main__":
    key = jax.random.PRNGKey(0)
    N, C, H, W = 2, 4, 16, 16
    x = jax.random.normal(key, (N, C, H, W), dtype=jnp.float32) * 2.0 + 0.5

    beta = jnp.zeros((C,), jnp.float32)       # torch.zeros(NumFeatures)
    gamma = jnp.ones((C,), jnp.float32)       # torch.ones(NumFeatures)
    running_mean = jnp.zeros((C,), jnp.float32)
    running_var = jnp.ones((C,), jnp.float32)
    thres = 1.0
    alpha = 0.9

    bn, new_mean, new_var = bn2d_filtered_moments_train(
        x, gamma, beta, running_mean, running_var, thres, alpha)
    jax.block_until_ready((bn, new_mean, new_var))

    bn_eval = bn2d_filtered_moments_eval(x, gamma, beta, running_mean, running_var)
    jax.block_until_ready(bn_eval)

    # sanity checks against pure-JAX reference
    ref_bn, ref_fm, ref_fv = _reference_train(x, gamma, beta, thres)
    ref_mean = alpha * running_mean + (1 - alpha) * ref_fm
    ref_var = alpha * running_var + (1 - alpha) * ref_fv
    assert jnp.allclose(bn, ref_bn, atol=1e-4, rtol=1e-4)
    assert jnp.allclose(new_mean, ref_mean, atol=1e-5, rtol=1e-5)
    assert jnp.allclose(new_var, ref_var, atol=1e-5, rtol=1e-5)

    x2 = jnp.transpose(x, (0, 2, 3, 1)).reshape(-1, C)
    ref_eval = (gamma * (x2 - running_mean) / jnp.sqrt(running_var + EPS) + beta
                ).reshape(N, H, W, C).transpose(0, 3, 1, 2)
    assert jnp.allclose(bn_eval, ref_eval, atol=1e-4, rtol=1e-4)

    print("KERNEL_OK")
</pallas_src>

<mosaic_0001>
module attributes {stable_mosaic.version = 11 : i64} {
  func.func @_moments_kernel(%arg0: i32, %arg1: i32, %arg2: i32, %arg3: memref<8x256xf32, #tpu.memory_space<vmem>>, %arg4: memref<8x1xf32, #tpu.memory_space<vmem>>, %arg5: memref<8x1xf32, #tpu.memory_space<vmem>>, %arg6: memref<8x1xf32, #tpu.memory_space<vmem>>) attributes {dimension_semantics = [#tpu.dimension_semantics<parallel>, #tpu.dimension_semantics<parallel>, #tpu.dimension_semantics<arbitrary>], iteration_bounds = array<i64: 1, 1, 1>, scalar_prefetch = 0 : i64, scratch_operands = 0 : i64, tpu.core_type = #tpu.core_type<tc>, window_params = [{transform_indices = @transform_0, window_bounds = array<i64: 8, 256>}, {transform_indices = @transform_1, window_bounds = array<i64: 8, 1>}, {transform_indices = @transform_2, window_bounds = array<i64: 8, 1>}, {transform_indices = @transform_3, window_bounds = array<i64: 8, 1>}]} {
    %c0_i32 = arith.constant 0 : i32
    %0 = arith.cmpi eq, %arg2, %c0_i32 : i32
    %1 = arith.extui %0 : i1 to i32
    %c0_i32_0 = arith.constant 0 : i32
    %2 = arith.cmpi ne, %1, %c0_i32_0 : i32
    scf.if %2 {
      %cst_13 = arith.constant 0.000000e+00 : f32
      %18 = vector.broadcast %cst_13 : f32 to vector<8x1xf32>
      %c0_14 = arith.constant 0 : index
      %c0_15 = arith.constant 0 : index
      %19 = vector.load %arg5[%c0_14, %c0_15] : memref<8x1xf32, #tpu.memory_space<vmem>>, vector<8x1xf32>
      tpu.vector_store %arg5[%c0_14, %c0_15], %18 {strides = array<i32>} : memref<8x1xf32, #tpu.memory_space<vmem>>, vector<8x1xf32>,
      %cst_16 = arith.constant 0.000000e+00 : f32
      %20 = vector.broadcast %cst_16 : f32 to vector<8x1xf32>
      %c0_17 = arith.constant 0 : index
      %c0_18 = arith.constant 0 : index
      %21 = vector.load %arg6[%c0_17, %c0_18] : memref<8x1xf32, #tpu.memory_space<vmem>>, vector<8x1xf32>
      tpu.vector_store %arg6[%c0_17, %c0_18], %20 {strides = array<i32>} : memref<8x1xf32, #tpu.memory_space<vmem>>, vector<8x1xf32>,
    } else {
    }
    %c0 = arith.constant 0 : index
    %c0_1 = arith.constant 0 : index
    %3 = vector.load %arg3[%c0, %c0_1] : memref<8x256xf32, #tpu.memory_space<vmem>>, vector<8x256xf32>
    %c0_2 = arith.constant 0 : index
    %c0_3 = arith.constant 0 : index
    %4 = vector.load %arg4[%c0_2, %c0_3] : memref<8x1xf32, #tpu.memory_space<vmem>>, vector<8x1xf32>
    %5 = vector.broadcast %4 : vector<8x1xf32> to vector<8x256xf32>
    %6 = arith.subf %3, %5 : vector<8x256xf32>
    %c0_4 = arith.constant 0 : index
    %c0_5 = arith.constant 0 : index
    %7 = vector.load %arg5[%c0_4, %c0_5] : memref<8x1xf32, #tpu.memory_space<vmem>>, vector<8x1xf32>
    %cst = arith.constant dense<0.000000e+00> : vector<8xf32>
    %8 = vector.multi_reduction <add>, %6, %cst [1] : vector<8x256xf32> to vector<8xf32>
    %9 = vector.shape_cast %8 : vector<8xf32> to vector<8x1xf32>
    %10 = arith.addf %7, %9 : vector<8x1xf32>
    %c0_6 = arith.constant 0 : index
    %c0_7 = arith.constant 0 : index
    %11 = vector.load %arg5[%c0_6, %c0_7] : memref<8x1xf32, #tpu.memory_space<vmem>>, vector<8x1xf32>
    tpu.vector_store %arg5[%c0_6, %c0_7], %10 {strides = array<i32>} : memref<8x1xf32, #tpu.memory_space<vmem>>, vector<8x1xf32>,
    %c0_8 = arith.constant 0 : index
    %c0_9 = arith.constant 0 : index
    %12 = vector.load %arg6[%c0_8, %c0_9] : memref<8x1xf32, #tpu.memory_space<vmem>>, vector<8x1xf32>
    %13 = arith.mulf %6, %6 : vector<8x256xf32>
    %cst_10 = arith.constant dense<0.000000e+00> : vector<8xf32>
    %14 = vector.multi_reduction <add>, %13, %cst_10 [1] : vector<8x256xf32> to vector<8xf32>
    %15 = vector.shape_cast %14 : vector<8xf32> to vector<8x1xf32>
    %16 = arith.addf %12, %15 : vector<8x1xf32>
    %c0_11 = arith.constant 0 : index
    %c0_12 = arith.constant 0 : index
    %17 = vector.load %arg6[%c0_11, %c0_12] : memref<8x1xf32, #tpu.memory_space<vmem>>, vector<8x1xf32>
    tpu.vector_store %arg6[%c0_11, %c0_12], %16 {strides = array<i32>} : memref<8x1xf32, #tpu.memory_space<vmem>>, vector<8x1xf32>,
    return
  }
  func.func @transform_0(%arg0: i32, %arg1: i32, %arg2: i32) -> (i32, i32) {
    %c1_i32 = arith.constant 1 : i32
    %0 = arith.muli %arg0, %c1_i32 : i32
    %1 = arith.addi %0, %arg2 : i32
    %c0_i32 = arith.constant 0 : i32
    return %arg1, %1 : i32, i32
  }
  func.func @transform_1(%arg0: i32, %arg1: i32, %arg2: i32) -> (i32, i32) {
    %c0_i32 = arith.constant 0 : i32
    %c0_i32_0 = arith.constant 0 : i32
    return %arg1, %c0_i32 : i32, i32
  }
  func.func @transform_2(%arg0: i32, %arg1: i32, %arg2: i32) -> (i32, i32) {
    %c1_i32 = arith.constant 1 : i32
    %0 = arith.muli %arg0, %c1_i32 : i32
    %1 = arith.addi %0, %arg1 : i32
    %c0_i32 = arith.constant 0 : i32
    %c0_i32_0 = arith.constant 0 : i32
    return %1, %c0_i32 : i32, i32
  }
  func.func @transform_3(%arg0: i32, %arg1: i32, %arg2: i32) -> (i32, i32) {
    %c1_i32 = arith.constant 1 : i32
    %0 = arith.muli %arg0, %c1_i32 : i32
    %1 = arith.addi %0, %arg1 : i32
    %c0_i32 = arith.constant 0 : i32
    %c0_i32_0 = arith.constant 0 : i32
    return %1, %c0_i32 : i32, i32
  }
}

module attributes {stable_mosaic.version = 11 : i64} {
  func.func @_filtered_kernel(%arg0: i32, %arg1: i32, %arg2: i32, %arg3: memref<8x256xf32, #tpu.memory_space<vmem>>, %arg4: memref<8x1xf32, #tpu.memory_space<vmem>>, %arg5: memref<8x1xf32, #tpu.memory_space<vmem>>, %arg6: memref<8x1xf32, #tpu.memory_space<vmem>>, %arg7: memref<8x1xf32, #tpu.memory_space<vmem>>, %arg8: memref<8x1xf32, #tpu.memory_space<vmem>>) attributes {dimension_semantics = [#tpu.dimension_semantics<parallel>, #tpu.dimension_semantics<parallel>, #tpu.dimension_semantics<arbitrary>], iteration_bounds = array<i64: 1, 1, 1>, scalar_prefetch = 0 : i64, scratch_operands = 0 : i64, tpu.core_type = #tpu.core_type<tc>, window_params = [{transform_indices = @transform_0, window_bounds = array<i64: 8, 256>}, {transform_indices = @transform_1, window_bounds = array<i64: 8, 1>}, {transform_indices = @transform_2, window_bounds = array<i64: 8, 1>}, {transform_indices = @transform_3, window_bounds = array<i64: 8, 1>}, {transform_indices = @transform_4, window_bounds = array<i64: 8, 1>}, {transform_indices = @transform_5, window_bounds = array<i64: 8, 1>}]} {
    %c0_i32 = arith.constant 0 : i32
    %0 = arith.cmpi eq, %arg2, %c0_i32 : i32
    %1 = arith.extui %0 : i1 to i32
    %c0_i32_0 = arith.constant 0 : i32
    %2 = arith.cmpi ne, %1, %c0_i32_0 : i32
    scf.if %2 {
      %cst_20 = arith.constant 0.000000e+00 : f32
      %30 = vector.broadcast %cst_20 : f32 to vector<8x1xf32>
      %c0_21 = arith.constant 0 : index
      %c0_22 = arith.constant 0 : index
      %31 = vector.load %arg6[%c0_21, %c0_22] : memref<8x1xf32, #tpu.memory_space<vmem>>, vector<8x1xf32>
      tpu.vector_store %arg6[%c0_21, %c0_22], %30 {strides = array<i32>} : memref<8x1xf32, #tpu.memory_space<vmem>>, vector<8x1xf32>,
      %cst_23 = arith.constant 0.000000e+00 : f32
      %32 = vector.broadcast %cst_23 : f32 to vector<8x1xf32>
      %c0_24 = arith.constant 0 : index
      %c0_25 = arith.constant 0 : index
      %33 = vector.load %arg7[%c0_24, %c0_25] : memref<8x1xf32, #tpu.memory_space<vmem>>, vector<8x1xf32>
      tpu.vector_store %arg7[%c0_24, %c0_25], %32 {strides = array<i32>} : memref<8x1xf32, #tpu.memory_space<vmem>>, vector<8x1xf32>,
      %cst_26 = arith.constant 0.000000e+00 : f32
      %34 = vector.broadcast %cst_26 : f32 to vector<8x1xf32>
      %c0_27 = arith.constant 0 : index
      %c0_28 = arith.constant 0 : index
      %35 = vector.load %arg8[%c0_27, %c0_28] : memref<8x1xf32, #tpu.memory_space<vmem>>, vector<8x1xf32>
      tpu.vector_store %arg8[%c0_27, %c0_28], %34 {strides = array<i32>} : memref<8x1xf32, #tpu.memory_space<vmem>>, vector<8x1xf32>,
    } else {
    }
    %c0 = arith.constant 0 : index
    %c0_1 = arith.constant 0 : index
    %3 = vector.load %arg4[%c0, %c0_1] : memref<8x1xf32, #tpu.memory_space<vmem>>, vector<8x1xf32>
    %c0_2 = arith.constant 0 : index
    %c0_3 = arith.constant 0 : index
    %4 = vector.load %arg5[%c0_2, %c0_3] : memref<8x1xf32, #tpu.memory_space<vmem>>, vector<8x1xf32>
    %c0_4 = arith.constant 0 : index
    %c0_5 = arith.constant 0 : index
    %5 = vector.load %arg3[%c0_4, %c0_5] : memref<8x256xf32, #tpu.memory_space<vmem>>, vector<8x256xf32>
    %6 = vector.broadcast %3 : vector<8x1xf32> to vector<8x256xf32>
    %7 = arith.subf %5, %6 : vector<8x256xf32>
    %8 = math.absf %7 : vector<8x256xf32>
    %9 = vector.broadcast %4 : vector<8x1xf32> to vector<8x256xf32>
    %10 = arith.cmpf olt, %8, %9 : vector<8x256xf32>
    %11 = arith.extui %10 : vector<8x256xi1> to vector<8x256xi32>
    %12 = arith.sitofp %11 : vector<8x256xi32> to vector<8x256xf32>
    %13 = arith.mulf %7, %12 : vector<8x256xf32>
    %cst = arith.constant dense<0.000000e+00> : vector<8xf32>
    %14 = vector.multi_reduction <add>, %12, %cst [1] : vector<8x256xf32> to vector<8xf32>
    %15 = vector.shape_cast %14 : vector<8xf32> to vector<8x1xf32>
    %cst_6 = arith.constant dense<0.000000e+00> : vector<8xf32>
    %16 = vector.multi_reduction <add>, %13, %cst_6 [1] : vector<8x256xf32> to vector<8xf32>
    %17 = vector.shape_cast %16 : vector<8xf32> to vector<8x1xf32>
    %18 = arith.mulf %7, %13 : vector<8x256xf32>
    %cst_7 = arith.constant dense<0.000000e+00> : vector<8xf32>
    %19 = vector.multi_reduction <add>, %18, %cst_7 [1] : vector<8x256xf32> to vector<8xf32>
    %20 = vector.shape_cast %19 : vector<8xf32> to vector<8x1xf32>
    %c0_8 = arith.constant 0 : index
    %c0_9 = arith.constant 0 : index
    %21 = vector.load %arg6[%c0_8, %c0_9] : memref<8x1xf32, #tpu.memory_space<vmem>>, vector<8x1xf32>
    %22 = arith.addf %21, %15 : vector<8x1xf32>
    %c0_10 = arith.constant 0 : index
    %c0_11 = arith.constant 0 : index
    %23 = vector.load %arg6[%c0_10, %c0_11] : memref<8x1xf32, #tpu.memory_space<vmem>>, vector<8x1xf32>
    tpu.vector_store %arg6[%c0_10, %c0_11], %22 {strides = array<i32>} : memref<8x1xf32, #tpu.memory_space<vmem>>, vector<8x1xf32>,
    %c0_12 = arith.constant 0 : index
    %c0_13 = arith.constant 0 : index
    %24 = vector.load %arg7[%c0_12, %c0_13] : memref<8x1xf32, #tpu.memory_space<vmem>>, vector<8x1xf32>
    %25 = arith.addf %24, %17 : vector<8x1xf32>
    %c0_14 = arith.constant 0 : index
    %c0_15 = arith.constant 0 : index
    %26 = vector.load %arg7[%c0_14, %c0_15] : memref<8x1xf32, #tpu.memory_space<vmem>>, vector<8x1xf32>
    tpu.vector_store %arg7[%c0_14, %c0_15], %25 {strides = array<i32>} : memref<8x1xf32, #tpu.memory_space<vmem>>, vector<8x1xf32>,
    %c0_16 = arith.constant 0 : index
    %c0_17 = arith.constant 0 : index
    %27 = vector.load %arg8[%c0_16, %c0_17] : memref<8x1xf32, #tpu.memory_space<vmem>>, vector<8x1xf32>
    %28 = arith.addf %27, %20 : vector<8x1xf32>
    %c0_18 = arith.constant 0 : index
    %c0_19 = arith.constant 0 : index
    %29 = vector.load %arg8[%c0_18, %c0_19] : memref<8x1xf32, #tpu.memory_space<vmem>>, vector<8x1xf32>
    tpu.vector_store %arg8[%c0_18, %c0_19], %28 {strides = array<i32>} : memref<8x1xf32, #tpu.memory_space<vmem>>, vector<8x1xf32>,
    return
  }
  func.func @transform_0(%arg0: i32, %arg1: i32, %arg2: i32) -> (i32, i32) {
    %c1_i32 = arith.constant 1 : i32
    %0 = arith.muli %arg0, %c1_i32 : i32
    %1 = arith.addi %0, %arg2 : i32
    %c0_i32 = arith.constant 0 : i32
    return %arg1, %1 : i32, i32
  }
  func.func @transform_1(%arg0: i32, %arg1: i32, %arg2: i32) -> (i32, i32) {
    %c0_i32 = arith.constant 0 : i32
    %c0_i32_0 = arith.constant 0 : i32
    return %arg1, %c0_i32 : i32, i32
  }
  func.func @transform_2(%arg0: i32, %arg1: i32, %arg2: i32) -> (i32, i32) {
    %c0_i32 = arith.constant 0 : i32
    %c0_i32_0 = arith.constant 0 : i32
    return %arg1, %c0_i32 : i32, i32
  }
  func.func @transform_3(%arg0: i32, %arg1: i32, %arg2: i32) -> (i32, i32) {
    %c1_i32 = arith.constant 1 : i32
    %0 = arith.muli %arg0, %c1_i32 : i32
    %1 = arith.addi %0, %arg1 : i32
    %c0_i32 = arith.constant 0 : i32
    %c0_i32_0 = arith.constant 0 : i32
    return %1, %c0_i32 : i32, i32
  }
  func.func @transform_4(%arg0: i32, %arg1: i32, %arg2: i32) -> (i32, i32) {
    %c1_i32 = arith.constant 1 : i32
    %0 = arith.muli %arg0, %c1_i32 : i32
    %1 = arith.addi %0, %arg1 : i32
    %c0_i32 = arith.constant 0 : i32
    %c0_i32_0 = arith.constant 0 : i32
    return %1, %c0_i32 : i32, i32
  }
  func.func @transform_5(%arg0: i32, %arg1: i32, %arg2: i32) -> (i32, i32) {
    %c1_i32 = arith.constant 1 : i32
    %0 = arith.muli %arg0, %c1_i32 : i32
    %1 = arith.addi %0, %arg1 : i32
    %c0_i32 = arith.constant 0 : i32
    %c0_i32_0 = arith.constant 0 : i32
    return %1, %c0_i32 : i32, i32
  }
}

module attributes {stable_mosaic.version = 11 : i64} {
  func.func @_apply_kernel(%arg0: i32, %arg1: i32, %arg2: memref<8x256xf32, #tpu.memory_space<vmem>>, %arg3: memref<8x1xf32, #tpu.memory_space<vmem>>, %arg4: memref<8x1xf32, #tpu.memory_space<vmem>>, %arg5: memref<8x256xf32, #tpu.memory_space<vmem>>) attributes {dimension_semantics = [#tpu.dimension_semantics<parallel>, #tpu.dimension_semantics<parallel>], iteration_bounds = array<i64: 1, 1>, scalar_prefetch = 0 : i64, scratch_operands = 0 : i64, tpu.core_type = #tpu.core_type<tc>, window_params = [{transform_indices = @transform_0, window_bounds = array<i64: 8, 256>}, {transform_indices = @transform_1, window_bounds = array<i64: 8, 1>}, {transform_indices = @transform_2, window_bounds = array<i64: 8, 1>}, {transform_indices = @transform_3, window_bounds = array<i64: 8, 256>}]} {
    %c0 = arith.constant 0 : index
    %c0_0 = arith.constant 0 : index
    %0 = vector.load %arg2[%c0, %c0_0] : memref<8x256xf32, #tpu.memory_space<vmem>>, vector<8x256xf32>
    %c0_1 = arith.constant 0 : index
    %c0_2 = arith.constant 0 : index
    %1 = vector.load %arg3[%c0_1, %c0_2] : memref<8x1xf32, #tpu.memory_space<vmem>>, vector<8x1xf32>
    %2 = vector.broadcast %1 : vector<8x1xf32> to vector<8x256xf32>
    %3 = arith.mulf %0, %2 : vector<8x256xf32>
    %c0_3 = arith.constant 0 : index
    %c0_4 = arith.constant 0 : index
    %4 = vector.load %arg4[%c0_3, %c0_4] : memref<8x1xf32, #tpu.memory_space<vmem>>, vector<8x1xf32>
    %5 = vector.broadcast %4 : vector<8x1xf32> to vector<8x256xf32>
    %6 = arith.addf %3, %5 : vector<8x256xf32>
    %c0_5 = arith.constant 0 : index
    %c0_6 = arith.constant 0 : index
    %7 = vector.load %arg5[%c0_5, %c0_6] : memref<8x256xf32, #tpu.memory_space<vmem>>, vector<8x256xf32>
    tpu.vector_store %arg5[%c0_5, %c0_6], %6 {strides = array<i32>} : memref<8x256xf32, #tpu.memory_space<vmem>>, vector<8x256xf32>,
    return
  }
  func.func @transform_0(%arg0: i32, %arg1: i32) -> (i32, i32) {
    %c0_i32 = arith.constant 0 : i32
    return %arg0, %arg1 : i32, i32
  }
  func.func @transform_1(%arg0: i32, %arg1: i32) -> (i32, i32) {
    %c0_i32 = arith.constant 0 : i32
    %c0_i32_0 = arith.constant 0 : i32
    return %arg0, %c0_i32 : i32, i32
  }
  func.func @transform_2(%arg0: i32, %arg1: i32) -> (i32, i32) {
    %c0_i32 = arith.constant 0 : i32
    %c0_i32_0 = arith.constant 0 : i32
    return %arg0, %c0_i32 : i32, i32
  }
  func.func @transform_3(%arg0: i32, %arg1: i32) -> (i32, i32) {
    %c0_i32 = arith.constant 0 : i32
    return %arg0, %arg1 : i32, i32
  }
}

</mosaic_0001>

<llo_original>
// kernel: bn2d_filtered_moments_train.3
$region0: #{bn2d_filtered_moments_train.3}
  #allocation0 [shape = 'u32[]', space=smem, size = 0x4, offset = 0x4, fixed_abs, tag = 'smem constant byte address 0x4 - core index']
  #allocation1 [shape = 'u32[144,128]{1,0:T(1,128)}', space=vmem, size = 0x12000, scoped, tag = 'internal scratch']
  %s0 = inlined_call_operand.vmem [shape: f32[8,256], index: 0, kind: input, shape index: {}]
  %s1 = inlined_call_operand.vmem [shape: f32[8,1], index: 1, kind: input, shape index: {}]
  %s2 = inlined_call_operand.vmem [shape: f32[8,1], index: 2, kind: output, shape index: {0}]
  %s3 = inlined_call_operand.vmem [shape: f32[8,1], index: 3, kind: output, shape index: {1}]
  %4 = xla_tuple %s2, %s3
  %s5 = sld [smem:[#allocation0]]
  $region30: #{bn2d_filtered_moments_train.3} parent=0
    _
  %s7 = ssub.s32 1, %s5
  %s8 = scalar_select 0, %s7, %s5
  // Predicated region
  $region2: #{bn2d_filtered_moments_train.3} parent=0 // pred_check
    _
  $region3: #{bn2d_filtered_moments_train.3} parent=0 // pred_check_branch
    %10 = sbr.rel (0) target = $region5
  $region4: #{bn2d_filtered_moments_train.3} parent=0 // pred_region
    %s11 = sadd.s32 0, 0
    %s12 = smul.u32 2, %s11
    %p13 = scmp.lt.s32.totalorder %s12, 1
    %s14 = scalar_select %p13, %s12, 1
    %s15 = smul.addr %s14, 8
    %s16 = scalar_lea.vmem %s0, %s15
    %s17 = sadd.s32 0, 0
    %s18 = smul.u32 2, %s17
  $region5: #{bn2d_filtered_moments_train.3} parent=0 // pred_fallthru
    _
  // Predicated region
  $region6: #{bn2d_filtered_moments_train.3} parent=0 // pred_check
    _
  $region7: #{bn2d_filtered_moments_train.3} parent=0 // pred_check_branch
    %20 = sbr.rel (0) target = $region9
  $region8: #{bn2d_filtered_moments_train.3} parent=0 // pred_region
    _
  $region9: #{bn2d_filtered_moments_train.3} parent=0 // pred_fallthru
    _
  %s21 = sadd.s32 0, 0
  %s22 = smul.u32 2, %s21
  %p23 = scmp.lt.s32.totalorder %s22, 1
  %s24 = scalar_select %p23, %s22, 1
  %s25 = smul.addr %s24, 8
  %s26 = scalar_lea.vmem %s0, %s25
  %s27 = sadd.s32 0, 0
  %p28 = scmp.lt.s32.totalorder %s27, 0
  %s29 = scalar_select %p28, %s27, 0
  %s30 = smul.addr %s29, 8
  %s31 = scalar_lea.vmem %s2, %s30
  %s32 = sadd.s32 0, 0
  %p33 = scmp.lt.s32.totalorder %s32, 0
  %s34 = scalar_select %p33, %s32, 0
  %s35 = smul.addr %s34, 8
  %s36 = scalar_lea.vmem %s3, %s35
  %s37 = sadd.s32 0, 0
  %s38 = smul.u32 2, %s37
  %p39 = scmp.lt.s32.totalorder %s38, 1
  %s40 = scalar_select %p39, %s38, 1
  %s41 = smul.addr %s40, 8
  %s42 = scalar_lea.vmem %s0, %s41
  %s43 = sadd.s32 0, 0
  %s44 = smul.u32 2, %s43
  %s45 = sadd.s32 0, 0
  %p46 = scmp.lt.s32.totalorder %s45, 0
  %s47 = scalar_select %p46, %s45, 0
  %s48 = smul.addr %s47, 8
  %s49 = scalar_lea.vmem %s2, %s48
  %s50 = sadd.s32 0, 0
  %s51 = sadd.s32 0, 0
  %p52 = scmp.lt.s32.totalorder %s51, 0
  %s53 = scalar_select %p52, %s51, 0
  %s54 = smul.addr %s53, 8
  %s55 = scalar_lea.vmem %s3, %s54
  %s56 = sadd.s32 0, 0
  %p57 = scmp.eq.s32.totalorder 0, 0
  // Predicated region
  $region10: #{bn2d_filtered_moments_train.3} parent=0 // pred_check
    %p58 = pneg %p57
  $region11: #{bn2d_filtered_moments_train.3} parent=0 // pred_check_branch
    %60 = sbr.rel (%p58) target = $region13
  $region12: #{bn2d_filtered_moments_train.3} parent=0 // pred_region
    %vm61 = vcmask 7168
    %62 = vst.msk [vmem:[%s49] sm:$0xff] %vm61, 0.0
    %63 = vst.msk [vmem:[%s55] sm:$0xff] %vm61, 0.0
  $region13: #{bn2d_filtered_moments_train.3} parent=0 // pred_fallthru
    _
  %v64 = vld [vmem:[%s42] sm:$0xff]
  %v65 = vld [vmem:[%s42 + $0x8] sm:$0xff]
  %v66 = vld [vmem:[%s1] sm:$0xff]
  %68 = vset.pattern.permute.xlu0 0
  %69 = vperm.xlu0 %68, %v66
  %v70 = vpop.permute.xlu0 %69
  %v72 = vsub.f32 %v64, %v70
  %v73 = vsub.f32 %v65, %v70
  %v74 = vld [vmem:[%s49] sm:$0xff]
  %v75 = vadd.f32 %v72, %v73
  %76 = vadd.xlane.f32.xlu0 %v75
  %v77 = vpop.xlane.xlu0 %76
  %v78 = vadd.f32 %v74, %v77
  %vm79 = vcmask 7168
  %80 = vst.msk [vmem:[%s49] sm:$0xff] %vm79, %v78
  %v81 = vld [vmem:[%s55] sm:$0xff]
  %v82 = vmul.f32 %v72, %v72
  %v83 = vmul.f32 %v73, %v73
  %v84 = vadd.f32 %v82, %v83
  %85 = vadd.xlane.f32.xlu0 %v84
  %v86 = vpop.xlane.xlu0 %85
  %v87 = vadd.f32 %v81, %v86
  %88 = vst.msk [vmem:[%s55] sm:$0xff] %vm79, %v87
  %s89 = sadd.s32 0, 0
  %p90 = scmp.lt.s32.totalorder %s89, 0
  %s91 = scalar_select %p90, %s89, 0
  %s92 = smul.addr %s91, 8
  %s93 = scalar_lea.vmem %s2, %s92
  %s94 = sadd.s32 0, 0
  %p95 = scmp.lt.s32.totalorder %s94, 0
  %s96 = scalar_select %p95, %s94, 0
  %s97 = smul.addr %s96, 8
  %s98 = scalar_lea.vmem %s3, %s97
  // Predicated region
  $region14: #{bn2d_filtered_moments_train.3} parent=0 // pred_check
    _
  $region15: #{bn2d_filtered_moments_train.3} parent=0 // pred_check_branch
    %100 = sbr.rel (0) target = $region17
  $region16: #{bn2d_filtered_moments_train.3} parent=0 // pred_region
    %s101 = sadd.s32 0, 0
  $region17: #{bn2d_filtered_moments_train.3} parent=0 // pred_fallthru
    _
  // Predicated region
  $region18: #{bn2d_filtered_moments_train.3} parent=0 // pred_check
    _
  $region19: #{bn2d_filtered_moments_train.3} parent=0 // pred_check_branch
    %103 = sbr.rel (0) target = $region21
  $region20: #{bn2d_filtered_moments_train.3} parent=0 // pred_region
    %s104 = sadd.s32 0, 0
  $region21: #{bn2d_filtered_moments_train.3} parent=0 // pred_fallthru
    _
  // Predicated region
  $region22: #{bn2d_filtered_moments_train.3} parent=0 // pred_check
    _
  $region23: #{bn2d_filtered_moments_train.3} parent=0 // pred_check_branch
    %106 = sbr.rel (0) target = $region25
  $region24: #{bn2d_filtered_moments_train.3} parent=0 // pred_region
    %s107 = sadd.s32 0, 0
    %p108 = scmp.lt.s32.totalorder %s107, 0
    %s109 = scalar_select %p108, %s107, 0
    %s110 = smul.addr %s109, 8
    %s111 = scalar_lea.vmem %s2, %s110
  $region25: #{bn2d_filtered_moments_train.3} parent=0 // pred_fallthru
    _
  // Predicated region
  $region26: #{bn2d_filtered_moments_train.3} parent=0 // pred_check
    _
  $region27: #{bn2d_filtered_moments_train.3} parent=0 // pred_check_branch
    %113 = sbr.rel (0) target = $region29
  $region28: #{bn2d_filtered_moments_train.3} parent=0 // pred_region
    %s114 = sadd.s32 0, 0
    %p115 = scmp.lt.s32.totalorder %s114, 0
    %s116 = scalar_select %p115, %s114, 0
    %s117 = smul.addr %s116, 8
    %s118 = scalar_lea.vmem %s3, %s117
  $region29: #{bn2d_filtered_moments_train.3} parent=0 // pred_fallthru
    _

// kernel: bn2d_filtered_moments_train.5
$region0: #{bn2d_filtered_moments_train.5}
  #allocation0 [shape = 'u32[]', space=smem, size = 0x4, offset = 0x4, fixed_abs, tag = 'smem constant byte address 0x4 - core index']
  #allocation1 [shape = 'u32[144,128]{1,0:T(1,128)}', space=vmem, size = 0x12000, scoped, tag = 'internal scratch']
  %s0 = inlined_call_operand.vmem [shape: f32[8,256], index: 0, kind: input, shape index: {}]
  %s1 = inlined_call_operand.vmem [shape: f32[8,1], index: 1, kind: input, shape index: {}]
  %s2 = inlined_call_operand.vmem [shape: f32[8,1], index: 2, kind: input, shape index: {}]
  %s3 = inlined_call_operand.vmem [shape: f32[8,256], index: 3, kind: output, shape index: {}]
  %s4 = sld [smem:[#allocation0]]
  $region22: #{bn2d_filtered_moments_train.5} parent=0
    _
  %s6 = ssub.s32 1, %s4
  %s7 = scalar_select 0, %s6, %s4
  // Predicated region
  $region2: #{bn2d_filtered_moments_train.5} parent=0 // pred_check
    _
  $region3: #{bn2d_filtered_moments_train.5} parent=0 // pred_check_branch
    %9 = sbr.rel (0) target = $region5
  $region4: #{bn2d_filtered_moments_train.5} parent=0 // pred_region
    _
  $region5: #{bn2d_filtered_moments_train.5} parent=0 // pred_fallthru
    _
  // Predicated region
  $region6: #{bn2d_filtered_moments_train.5} parent=0 // pred_check
    _
  $region7: #{bn2d_filtered_moments_train.5} parent=0 // pred_check_branch
    %11 = sbr.rel (0) target = $region9
  $region8: #{bn2d_filtered_moments_train.5} parent=0 // pred_region
    _
  $region9: #{bn2d_filtered_moments_train.5} parent=0 // pred_fallthru
    _
  // Predicated region
  $region10: #{bn2d_filtered_moments_train.5} parent=0 // pred_check
    _
  $region11: #{bn2d_filtered_moments_train.5} parent=0 // pred_check_branch
    %13 = sbr.rel (0) target = $region13
  $region12: #{bn2d_filtered_moments_train.5} parent=0 // pred_region
    _
  $region13: #{bn2d_filtered_moments_train.5} parent=0 // pred_fallthru
    _
  %v14 = vld [vmem:[%s0] sm:$0xff]
  %v15 = vld [vmem:[%s0 + $0x8] sm:$0xff]
  %v16 = vld [vmem:[%s1] sm:$0xff]
  %18 = vset.pattern.permute.xlu0 0
  %19 = vperm.xlu0 %18, %v16
  %v20 = vpop.permute.xlu0 %19
  %v22 = vmul.f32 %v14, %v20
  %v23 = vmul.f32 %v15, %v20
  %v24 = vld [vmem:[%s2] sm:$0xff]
  %26 = vset.pattern.permute.xlu0 0
  %27 = vperm.xlu0 %26, %v24
  %v28 = vpop.permute.xlu0 %27
  %v30 = vadd.f32 %v22, %v28
  %v31 = vadd.f32 %v23, %v28
  %32 = vst [vmem:[%s3] sm:$0xff] %v30
  %33 = vst [vmem:[%s3 + $0x8] sm:$0xff] %v31
  // Predicated region
  $region14: #{bn2d_filtered_moments_train.5} parent=0 // pred_check
    _
  $region15: #{bn2d_filtered_moments_train.5} parent=0 // pred_check_branch
    %35 = sbr.rel (0) target = $region17
  $region16: #{bn2d_filtered_moments_train.5} parent=0 // pred_region
    _
  $region17: #{bn2d_filtered_moments_train.5} parent=0 // pred_fallthru
    _
  // Predicated region
  $region18: #{bn2d_filtered_moments_train.5} parent=0 // pred_check
    _
  $region19: #{bn2d_filtered_moments_train.5} parent=0 // pred_check_branch
    %37 = sbr.rel (0) target = $region21
  $region20: #{bn2d_filtered_moments_train.5} parent=0 // pred_region
    _
  $region21: #{bn2d_filtered_moments_train.5} parent=0 // pred_fallthru
    _

// kernel: bn2d_filtered_moments_train.4
$region0: #{bn2d_filtered_moments_train.4}
  #allocation0 [shape = 'u32[]', space=smem, size = 0x4, offset = 0x4, fixed_abs, tag = 'smem constant byte address 0x4 - core index']
  #allocation1 [shape = 'u32[144,128]{1,0:T(1,128)}', space=vmem, size = 0x12000, scoped, tag = 'internal scratch']
  %s0 = inlined_call_operand.vmem [shape: f32[8,256], index: 0, kind: input, shape index: {}]
  %s1 = inlined_call_operand.vmem [shape: f32[8,1], index: 1, kind: input, shape index: {}]
  %s2 = inlined_call_operand.vmem [shape: f32[8,1], index: 2, kind: input, shape index: {}]
  %s3 = inlined_call_operand.vmem [shape: f32[8,1], index: 3, kind: output, shape index: {0}]
  %s4 = inlined_call_operand.vmem [shape: f32[8,1], index: 4, kind: output, shape index: {1}]
  %s5 = inlined_call_operand.vmem [shape: f32[8,1], index: 5, kind: output, shape index: {2}]
  %6 = xla_tuple %s3, %s4, %s5
  %s7 = sld [smem:[#allocation0]]
  $region42: #{bn2d_filtered_moments_train.4} parent=0
    _
  %s9 = ssub.s32 1, %s7
  %s10 = scalar_select 0, %s9, %s7
  // Predicated region
  $region2: #{bn2d_filtered_moments_train.4} parent=0 // pred_check
    _
  $region3: #{bn2d_filtered_moments_train.4} parent=0 // pred_check_branch
    %12 = sbr.rel (0) target = $region5
  $region4: #{bn2d_filtered_moments_train.4} parent=0 // pred_region
    %s13 = sadd.s32 0, 0
    %s14 = smul.u32 2, %s13
    %p15 = scmp.lt.s32.totalorder %s14, 1
    %s16 = scalar_select %p15, %s14, 1
    %s17 = smul.addr %s16, 8
    %s18 = scalar_lea.vmem %s0, %s17
    %s19 = sadd.s32 0, 0
    %s20 = smul.u32 2, %s19
  $region5: #{bn2d_filtered_moments_train.4} parent=0 // pred_fallthru
    _
  // Predicated region
  $region6: #{bn2d_filtered_moments_train.4} parent=0 // pred_check
    _
  $region7: #{bn2d_filtered_moments_train.4} parent=0 // pred_check_branch
    %22 = sbr.rel (0) target = $region9
  $region8: #{bn2d_filtered_moments_train.4} parent=0 // pred_region
    _
  $region9: #{bn2d_filtered_moments_train.4} parent=0 // pred_fallthru
    _
  // Predicated region
  $region10: #{bn2d_filtered_moments_train.4} parent=0 // pred_check
    _
  $region11: #{bn2d_filtered_moments_train.4} parent=0 // pred_check_branch
    %24 = sbr.rel (0) target = $region13
  $region12: #{bn2d_filtered_moments_train.4} parent=0 // pred_region
    _
  $region13: #{bn2d_filtered_moments_train.4} parent=0 // pred_fallthru
    _
  %s25 = sadd.s32 0, 0
  %s26 = smul.u32 2, %s25
  %p27 = scmp.lt.s32.totalorder %s26, 1
  %s28 = scalar_select %p27, %s26, 1
  %s29 = smul.addr %s28, 8
  %s30 = scalar_lea.vmem %s0, %s29
  %s31 = sadd.s32 0, 0
  %p32 = scmp.lt.s32.totalorder %s31, 0
  %s33 = scalar_select %p32, %s31, 0
  %s34 = smul.addr %s33, 8
  %s35 = scalar_lea.vmem %s3, %s34
  %s36 = sadd.s32 0, 0
  %p37 = scmp.lt.s32.totalorder %s36, 0
  %s38 = scalar_select %p37, %s36, 0
  %s39 = smul.addr %s38, 8
  %s40 = scalar_lea.vmem %s4, %s39
  %s41 = sadd.s32 0, 0
  %p42 = scmp.lt.s32.totalorder %s41, 0
  %s43 = scalar_select %p42, %s41, 0
  %s44 = smul.addr %s43, 8
  %s45 = scalar_lea.vmem %s5, %s44
  %s46 = sadd.s32 0, 0
  %s47 = smul.u32 2, %s46
  %p48 = scmp.lt.s32.totalorder %s47, 1
  %s49 = scalar_select %p48, %s47, 1
  %s50 = smul.addr %s49, 8
  %s51 = scalar_lea.vmem %s0, %s50
  %s52 = sadd.s32 0, 0
  %s53 = smul.u32 2, %s52
  %s54 = sadd.s32 0, 0
  %p55 = scmp.lt.s32.totalorder %s54, 0
  %s56 = scalar_select %p55, %s54, 0
  %s57 = smul.addr %s56, 8
  %s58 = scalar_lea.vmem %s3, %s57
  %s59 = sadd.s32 0, 0
  %s60 = sadd.s32 0, 0
  %p61 = scmp.lt.s32.totalorder %s60, 0
  %s62 = scalar_select %p61, %s60, 0
  %s63 = smul.addr %s62, 8
  %s64 = scalar_lea.vmem %s4, %s63
  %s65 = sadd.s32 0, 0
  %s66 = sadd.s32 0, 0
  %p67 = scmp.lt.s32.totalorder %s66, 0
  %s68 = scalar_select %p67, %s66, 0
  %s69 = smul.addr %s68, 8
  %s70 = scalar_lea.vmem %s5, %s69
  %s71 = sadd.s32 0, 0
  %p72 = scmp.eq.s32.totalorder 0, 0
  // Predicated region
  $region14: #{bn2d_filtered_moments_train.4} parent=0 // pred_check
    %p73 = pneg %p72
  $region15: #{bn2d_filtered_moments_train.4} parent=0 // pred_check_branch
    %75 = sbr.rel (%p73) target = $region17
  $region16: #{bn2d_filtered_moments_train.4} parent=0 // pred_region
    %vm76 = vcmask 7168
    %77 = vst.msk [vmem:[%s58] sm:$0xff] %vm76, 0.0
    %78 = vst.msk [vmem:[%s64] sm:$0xff] %vm76, 0.0
    %79 = vst.msk [vmem:[%s70] sm:$0xff] %vm76, 0.0
  $region17: #{bn2d_filtered_moments_train.4} parent=0 // pred_fallthru
    _
  %v80 = vld [vmem:[%s1] sm:$0xff]
  %v81 = vld [vmem:[%s2] sm:$0xff]
  %v82 = vld [vmem:[%s51] sm:$0xff]
  %v83 = vld [vmem:[%s51 + $0x8] sm:$0xff]
  %85 = vset.pattern.permute.xlu0 0
  %86 = vperm.xlu0 %85, %v80
  %v87 = vpop.permute.xlu0 %86
  %v89 = vsub.f32 %v82, %v87
  %v90 = vsub.f32 %v83, %v87
  %v91 = vand.u32 2147483647, %v89
  %v92 = vand.u32 2147483647, %v90
  %94 = vset.pattern.permute.xlu0 0
  %95 = vperm.xlu0 %94, %v81
  %v96 = vpop.permute.xlu0 %95
  %vm98 = vcmp.lt.f32.partialorder %v91, %v96
  %vm99 = vcmp.lt.f32.partialorder %v92, %v96
  %v100 = vsel %vm98, 1, 0
  %v101 = vsel %vm99, 1, 0
  %v102 = vcvt.s32.f32 %v100
  %v103 = vcvt.s32.f32 %v101
  %v104 = vmul.f32 %v89, %v102
  %v105 = vmul.f32 %v90, %v103
  %v106 = vadd.f32 %v102, %v103
  %107 = vadd.xlane.f32.xlu0 %v106
  %v108 = vpop.xlane.xlu0 %107
  %v109 = vadd.f32 %v104, %v105
  %110 = vadd.xlane.f32.xlu0 %v109
  %v111 = vpop.xlane.xlu0 %110
  %v112 = vmul.f32 %v89, %v104
  %v113 = vmul.f32 %v90, %v105
  %v114 = vadd.f32 %v112, %v113
  %115 = vadd.xlane.f32.xlu0 %v114
  %v116 = vpop.xlane.xlu0 %115
  %v117 = vld [vmem:[%s58] sm:$0xff]
  %v118 = vadd.f32 %v117, %v108
  %vm119 = vcmask 7168
  %120 = vst.msk [vmem:[%s58] sm:$0xff] %vm119, %v118
  %v121 = vld [vmem:[%s64] sm:$0xff]
  %v122 = vadd.f32 %v121, %v111
  %123 = vst.msk [vmem:[%s64] sm:$0xff] %vm119, %v122
  %v124 = vld [vmem:[%s70] sm:$0xff]
  %v125 = vadd.f32 %v124, %v116
  %126 = vst.msk [vmem:[%s70] sm:$0xff] %vm119, %v125
  %s127 = sadd.s32 0, 0
  %p128 = scmp.lt.s32.totalorder %s127, 0
  %s129 = scalar_select %p128, %s127, 0
  %s130 = smul.addr %s129, 8
  %s131 = scalar_lea.vmem %s3, %s130
  %s132 = sadd.s32 0, 0
  %p133 = scmp.lt.s32.totalorder %s132, 0
  %s134 = scalar_select %p133, %s132, 0
  %s135 = smul.addr %s134, 8
  %s136 = scalar_lea.vmem %s4, %s135
  %s137 = sadd.s32 0, 0
  %p138 = scmp.lt.s32.totalorder %s137, 0
  %s139 = scalar_select %p138, %s137, 0
  %s140 = smul.addr %s139, 8
  %s141 = scalar_lea.vmem %s5, %s140
  // Predicated region
  $region18: #{bn2d_filtered_moments_train.4} parent=0 // pred_check
    _
  $region19: #{bn2d_filtered_moments_train.4} parent=0 // pred_check_branch
    %143 = sbr.rel (0) target = $region21
  $region20: #{bn2d_filtered_moments_train.4} parent=0 // pred_region
    %s144 = sadd.s32 0, 0
  $region21: #{bn2d_filtered_moments_train.4} parent=0 // pred_fallthru
    _
  // Predicated region
  $region22: #{bn2d_filtered_moments_train.4} parent=0 // pred_check
    _
  $region23: #{bn2d_filtered_moments_train.4} parent=0 // pred_check_branch
    %146 = sbr.rel (0) target = $region25
  $region24: #{bn2d_filtered_moments_train.4} parent=0 // pred_region
    %s147 = sadd.s32 0, 0
  $region25: #{bn2d_filtered_moments_train.4} parent=0 // pred_fallthru
    _
  // Predicated region
  $region26: #{bn2d_filtered_moments_train.4} parent=0 // pred_check
    _
  $region27: #{bn2d_filtered_moments_train.4} parent=0 // pred_check_branch
    %149 = sbr.rel (0) target = $region29
  $region28: #{bn2d_filtered_moments_train.4} parent=0 // pred_region
    %s150 = sadd.s32 0, 0
  $region29: #{bn2d_filtered_moments_train.4} parent=0 // pred_fallthru
    _
  // Predicated region
  $region30: #{bn2d_filtered_moments_train.4} parent=0 // pred_check
    _
  $region31: #{bn2d_filtered_moments_train.4} parent=0 // pred_check_branch
    %152 = sbr.rel (0) target = $region33
  $region32: #{bn2d_filtered_moments_train.4} parent=0 // pred_region
    %s153 = sadd.s32 0, 0
    %p154 = scmp.lt.s32.totalorder %s153, 0
    %s155 = scalar_select %p154, %s153, 0
    %s156 = smul.addr %s155, 8
    %s157 = scalar_lea.vmem %s3, %s156
  $region33: #{bn2d_filtered_moments_train.4} parent=0 // pred_fallthru
    _
  // Predicated region
  $region34: #{bn2d_filtered_moments_train.4} parent=0 // pred_check
    _
  $region35: #{bn2d_filtered_moments_train.4} parent=0 // pred_check_branch
    %159 = sbr.rel (0) target = $region37
  $region36: #{bn2d_filtered_moments_train.4} parent=0 // pred_region
    %s160 = sadd.s32 0, 0
    %p161 = scmp.lt.s32.totalorder %s160, 0
    %s162 = scalar_select %p161, %s160, 0
    %s163 = smul.addr %s162, 8
    %s164 = scalar_lea.vmem %s4, %s163
  $region37: #{bn2d_filtered_moments_train.4} parent=0 // pred_fallthru
    _
  // Predicated region
  $region38: #{bn2d_filtered_moments_train.4} parent=0 // pred_check
    _
  $region39: #{bn2d_filtered_moments_train.4} parent=0 // pred_check_branch
    %166 = sbr.rel (0) target = $region41
  $region40: #{bn2d_filtered_moments_train.4} parent=0 // pred_region
    %s167 = sadd.s32 0, 0
    %p168 = scmp.lt.s32.totalorder %s167, 0
    %s169 = scalar_select %p168, %s167, 0
    %s170 = smul.addr %s169, 8
    %s171 = scalar_lea.vmem %s5, %s170
  $region41: #{bn2d_filtered_moments_train.4} parent=0 // pred_fallthru
    _

</llo_original>
